<compile_context>
chip_gen: v6e
topology: v6e:2x2x1
jax: 0.10.0
libtpu: 0.0.40
codegen_flags: <defaults>
</compile_context>

<pallas_src>
import functools
import math

import jax
import jax.numpy as jnp
from jax.experimental import pallas as pl
from jax.experimental.pallas import tpu as pltpu

LANE = 128
EPS = 1e-5
NEG_INF = -1e9  # masks padded logit lanes before softmax


def _classifier_kernel(x_ref, w_ref, v_ref, out_ref,
                       stats_ref, h1_cache, h2_cache, *, inv_b, x_dim):
    phase = pl.program_id(0)   # 0: layer1+stats1, 1: layer2+stats2, 2: logits/softmax/out
    tile = pl.program_id(1)    # batch tile

    # ------------ phase 0: h1 = ReLU(x @ W1 + b1); accumulate BN1 stats; cache h1 ------------
    @pl.when(phase == 0)
    def _phase0():
        @pl.when(tile == 0)
        def _init():
            stats_ref[...] = jnp.zeros_like(stats_ref)

        w1 = w_ref[0:x_dim, :]                                             # (x_dim,128) bf16
        h1 = jnp.dot(x_ref[...].astype(jnp.bfloat16), w1,
                     preferred_element_type=jnp.float32)                   # (T,128) f32
        h1 = jnp.maximum(h1 + v_ref[0:1, :], 0.0)
        stats_ref[0:1, :] += jnp.sum(h1, axis=0, keepdims=True)
        stats_ref[1:2, :] += jnp.sum(h1 * h1, axis=0, keepdims=True)
        h1_cache[tile] = h1.astype(jnp.bfloat16)

    # ------------ phase 1: fold BN1; h2 = ReLU(h1n @ W2 + b2); stats2; cache h2 --------------
    @pl.when(phase == 1)
    def _phase1():
        w2 = w_ref[x_dim:x_dim + LANE, :]                                  # (128,128) bf16

        @pl.when(tile == 0)
        def _fold1():  # stats-only math, hoisted: once per phase, not per tile
            mean1 = stats_ref[0:1, :] * inv_b
            var1 = jnp.maximum(stats_ref[1:2, :] * inv_b - mean1 * mean1, 0.0)
            s1 = v_ref[1:2, :] * jax.lax.rsqrt(var1 + EPS)                 # gamma1*rsqrt(var)
            t1 = v_ref[2:3, :] - mean1 * s1                                # beta1 - mean*scale
            shift2 = jnp.dot(t1.astype(jnp.bfloat16), w2,
                             preferred_element_type=jnp.float32) + v_ref[3:4, :]
            stats_ref[4:5, :] = s1
            stats_ref[5:6, :] = shift2

        s1 = stats_ref[4:5, :]
        shift2 = stats_ref[5:6, :]
        h1 = h1_cache[tile]                                                # (T,128) bf16
        h2 = jnp.dot((h1 * s1).astype(jnp.bfloat16), w2,
                     preferred_element_type=jnp.float32) + shift2
        h2 = jnp.maximum(h2, 0.0)
        stats_ref[2:3, :] += jnp.sum(h2, axis=0, keepdims=True)
        stats_ref[3:4, :] += jnp.sum(h2 * h2, axis=0, keepdims=True)
        h2_cache[tile] = h2.astype(jnp.bfloat16)

    # ------------ phase 2: fold BN2; logits; softmax; write lane-dense output ----------------
    @pl.when(phase == 2)
    def _phase2():
        w3 = w_ref[x_dim + LANE:x_dim + 2 * LANE, :]                       # (128,128) bf16

        @pl.when(tile == 0)
        def _fold2():
            mean2 = stats_ref[2:3, :] * inv_b
            var2 = jnp.maximum(stats_ref[3:4, :] * inv_b - mean2 * mean2, 0.0)
            s2 = v_ref[4:5, :] * jax.lax.rsqrt(var2 + EPS)
            t2 = v_ref[5:6, :] - mean2 * s2
            # b3 row (v_ref[6]) is pre-padded with -1e9 on lanes >= y_dim so padded logits
            # vanish under exp() and the softmax over the 128-lane block stays exact.
            shift3 = jnp.dot(t2.astype(jnp.bfloat16), w3,
                             preferred_element_type=jnp.float32) + v_ref[6:7, :]
            stats_ref[6:7, :] = s2
            stats_ref[7:8, :] = shift3

        s2 = stats_ref[6:7, :]
        shift3 = stats_ref[7:8, :]
        h2 = h2_cache[tile]                                                # (T,128) bf16
        logits = jnp.dot((h2 * s2).astype(jnp.bfloat16), w3,
                         preferred_element_type=jnp.float32) + shift3
        m = jnp.max(logits, axis=-1, keepdims=True)
        e = jnp.exp(logits - m)
        denom = jnp.sum(e, axis=-1, keepdims=True)
        # Exact reciprocal (approx=False): rows sum to 1, safe for downstream log(probs).
        out_ref[...] = e * pl.reciprocal(denom, approx=False)              # (T,128) lane-dense


def pack_params(params):
    """Pack 10 parameter tensors into 2 lane-dense arrays (bf16 weight slab, f32 vectors)."""
    (w1t, b1, g1, be1, w2t, b2, g2, be2, w3t, b3) = params
    x_dim, h0 = w1t.shape
    _, h1 = w2t.shape
    _, y_dim = w3t.shape
    assert x_dim % 16 == 0, "x_dim must be a multiple of 16 (bf16 sublane tile)"
    assert max(h0, h1, y_dim) <= LANE, "hidden/output widths must fit in one 128-lane tile"

    # Weight slab: rows [0,x_dim)=W1, [x_dim,x_dim+128)=W2, [x_dim+128,x_dim+256)=W3.
    wp = jnp.zeros((x_dim + 2 * LANE, LANE), jnp.float32)
    wp = wp.at[0:x_dim, 0:h0].set(w1t)
    wp = wp.at[x_dim:x_dim + h0, 0:h1].set(w2t)
    wp = wp.at[x_dim + LANE:x_dim + LANE + h1, 0:y_dim].set(w3t)
    wp = wp.astype(jnp.bfloat16)  # bf16 matmul operands, f32 accumulate in-kernel

    # Vector slab (f32): b1,g1,be1,b2,g2,be2,b3(+softmax lane mask),pad.
    vp = jnp.zeros((8, LANE), jnp.float32)
    vp = vp.at[0, 0:h0].set(b1.reshape(-1))
    vp = vp.at[1, 0:h0].set(g1.reshape(-1))
    vp = vp.at[2, 0:h0].set(be1.reshape(-1))
    vp = vp.at[3, 0:h1].set(b2.reshape(-1))
    vp = vp.at[4, 0:h1].set(g2.reshape(-1))
    vp = vp.at[5, 0:h1].set(be2.reshape(-1))
    vp = vp.at[6, :].set(NEG_INF)
    vp = vp.at[6, 0:y_dim].set(b3.reshape(-1))
    return wp, vp, int(y_dim)


@functools.partial(jax.jit, static_argnames=("y_dim", "tile_b"))
def classifier_forward(x, w_packed, v_packed, *, y_dim, tile_b=512):
    B, x_dim = x.shape
    tile_b = min(tile_b, B)
    # TODO(synk): pad + row-mask the BN statistics for batches not divisible by tile_b.
    assert B % tile_b == 0 and tile_b % 16 == 0
    assert x_dim % 16 == 0
    num_tiles = B // tile_b

    # VMEM budget: double-buffered x/out tiles, resident params, whole-batch bf16
    # activation caches, stats scratch.  Sized explicitly so it also fits v7x (64 MiB
    # physical / 32 MiB default scoped) and v5e's 16 MiB default scoped limit.
    # TODO(synk): fall back to a recompute (no-cache) path for very large B.
    f32, bf16 = 4, 2
    vmem_bytes = (
        2 * tile_b * x_dim * f32                       # x tile (double-buffered)
        + 2 * (x_dim + 2 * LANE) * LANE * bf16         # weight slab
        + 2 * 8 * LANE * f32                           # vector slab
        + 2 * tile_b * LANE * f32                      # output tile
        + 2 * B * LANE * bf16                          # h1 + h2 whole-batch caches
        + 8 * LANE * f32                               # stats scratch
    )
    vmem_limit = int(min(max(2 * vmem_bytes, 32 << 20), 56 << 20))

    kernel = functools.partial(_classifier_kernel, inv_b=1.0 / B, x_dim=x_dim)
    out_padded = pl.pallas_call(
        kernel,
        out_shape=jax.ShapeDtypeStruct((B, LANE), jnp.float32),       # lane-dense output
        grid=(3, num_tiles),                                          # (phase, batch tile)
        in_specs=[
            # x is only consumed in phase 0; pin the block index afterwards so each x tile
            # is DMA'd exactly once (1x HBM read instead of 3x).
            pl.BlockSpec((tile_b, x_dim),
                         lambda p, i: (jnp.where(p == 0, i, num_tiles - 1), 0)),
            pl.BlockSpec((x_dim + 2 * LANE, LANE), lambda p, i: (0, 0)),  # weights, resident
            pl.BlockSpec((8, LANE), lambda p, i: (0, 0)),                 # vectors, resident
        ],
        # Output is only produced in phase 2; pin earlier phases to block 0 so each output
        # block is written back to HBM exactly once (instead of 3x).
        out_specs=pl.BlockSpec((tile_b, LANE),
                               lambda p, i: (jnp.where(p == 2, i, 0), 0)),
        scratch_shapes=[
            pltpu.VMEM((8, LANE), jnp.float32),                   # BN sums + folded scale/shift
            pltpu.VMEM((num_tiles, tile_b, LANE), jnp.bfloat16),  # h1 cache (whole batch)
            pltpu.VMEM((num_tiles, tile_b, LANE), jnp.bfloat16),  # h2 cache (whole batch)
        ],
        compiler_params=pltpu.CompilerParams(
            # Both grid axes carry state (BN statistics, activation caches) in scratch, so
            # they must stay sequential; "parallel" batch sharding would break full-batch BN.
            dimension_semantics=("arbitrary", "arbitrary"),
            vmem_limit_bytes=vmem_limit),
    )(x, w_packed, v_packed)
    return out_padded[:, :y_dim]


def init_params(key, x_dim, h_dim, y_dim):
    """Deterministic init mimicking PyTorch defaults (uniform +-1/sqrt(fan_in))."""
    def linear(key, fan_in, fan_out):
        kw, kb = jax.random.split(key)
        bound = 1.0 / math.sqrt(fan_in)
        # PyTorch weight shape is (out, in); pre-transposed to (in, out) for the kernel.
        w_t = jax.random.uniform(kw, (fan_in, fan_out), jnp.float32, -bound, bound)
        b = jax.random.uniform(kb, (1, fan_out), jnp.float32, -bound, bound)
        return w_t, b

    k1, k2, k3 = jax.random.split(key, 3)
    w1t, b1 = linear(k1, x_dim, h_dim[0])
    w2t, b2 = linear(k2, h_dim[0], h_dim[1])
    w3t, b3 = linear(k3, h_dim[1], y_dim)
    g1 = jnp.ones((1, h_dim[0]), jnp.float32)
    be1 = jnp.zeros((1, h_dim[0]), jnp.float32)
    g2 = jnp.ones((1, h_dim[1]), jnp.float32)
    be2 = jnp.zeros((1, h_dim[1]), jnp.float32)
    return (w1t, b1, g1, be1, w2t, b2, g2, be2, w3t, b3)


def reference_forward(x, params):
    """Pure-JAX f32 reference of the PyTorch forward (training-mode BN)."""
    (w1t, b1, g1, be1, w2t, b2, g2, be2, w3t, b3) = params

    def bn(h, g, be):
        mean = jnp.mean(h, axis=0, keepdims=True)
        var = jnp.mean((h - mean) ** 2, axis=0, keepdims=True)
        return (h - mean) / jnp.sqrt(var + EPS) * g + be

    h = x @ w1t + b1
    h = jax.nn.relu(h)
    h = bn(h, g1, be1)
    h = h @ w2t + b2
    h = jax.nn.relu(h)
    h = bn(h, g2, be2)
    return jax.nn.softmax(h @ w3t + b3, axis=-1)


if __name__ == "__main__":
    key = jax.random.PRNGKey(0)
    kx, kp = jax.random.split(key)

    B, x_dim, h_dim, y_dim = 32, 32, [64, 32], 8
    x = jax.random.normal(kx, (B, x_dim), jnp.float32)
    params = init_params(kp, x_dim, h_dim, y_dim)
    w_packed, v_packed, y_dim_packed = pack_params(params)

    # Correctness test (not a benchmark): tile_b=16 with B=32 exercises the multi-tile
    # (cross-tile BN stats + activation-cache) path.
    out = classifier_forward(x, w_packed, v_packed, y_dim=y_dim_packed, tile_b=16)
    out = jax.block_until_ready(out)

    ref = reference_forward(x, params)
    assert out.shape == (B, y_dim)
    # Exact softmax reciprocal -> rows sum to 1 up to f32 rounding.
    assert jnp.allclose(jnp.sum(out, axis=-1), 1.0, atol=1e-3)
    # bf16 matmul operands / bf16 activation caches -> looser tolerance vs f32 reference.
    assert jnp.allclose(out, ref, atol=3e-2, rtol=3e-2)

    print("KERNEL_OK")
</pallas_src>

<mosaic_0001>
module attributes {stable_mosaic.version = 11 : i64} {
  func.func @_classifier_kernel(%arg0: i32, %arg1: i32, %arg2: memref<16x32xf32, #tpu.memory_space<vmem>>, %arg3: memref<288x128xbf16, #tpu.memory_space<vmem>>, %arg4: memref<8x128xf32, #tpu.memory_space<vmem>>, %arg5: memref<16x128xf32, #tpu.memory_space<vmem>>, %arg6: memref<8x128xf32, #tpu.memory_space<vmem>>, %arg7: memref<2x16x128xbf16, #tpu.memory_space<vmem>>, %arg8: memref<2x16x128xbf16, #tpu.memory_space<vmem>>) attributes {dimension_semantics = [#tpu.dimension_semantics<arbitrary>, #tpu.dimension_semantics<arbitrary>], iteration_bounds = array<i64: 3, 2>, scalar_prefetch = 0 : i64, scratch_operands = 3 : i64, tpu.core_type = #tpu.core_type<tc>, window_params = [{transform_indices = @transform_0, window_bounds = array<i64: 16, 32>}, {pipeline_mode = #tpu.pipeline_mode<synchronous>, transform_indices = @transform_1, window_bounds = array<i64: 288, 128>}, {pipeline_mode = #tpu.pipeline_mode<synchronous>, transform_indices = @transform_2, window_bounds = array<i64: 8, 128>}, {transform_indices = @transform_3, window_bounds = array<i64: 16, 128>}]} {
    %c0_i32 = arith.constant 0 : i32
    %0 = arith.cmpi eq, %arg0, %c0_i32 : i32
    %1 = arith.extui %0 : i1 to i32
    %c0_i32_0 = arith.constant 0 : i32
    %2 = arith.cmpi ne, %1, %c0_i32_0 : i32
    scf.if %2 {
      %c0_i32_3 = arith.constant 0 : i32
      %9 = arith.cmpi eq, %arg1, %c0_i32_3 : i32
      %10 = arith.extui %9 : i1 to i32
      %c0_i32_4 = arith.constant 0 : i32
      %11 = arith.cmpi ne, %10, %c0_i32_4 : i32
      scf.if %11 {
        %cst_22 = arith.constant 0.000000e+00 : f32
        %37 = vector.broadcast %cst_22 : f32 to vector<8x128xf32>
        %c0_23 = arith.constant 0 : index
        %c0_24 = arith.constant 0 : index
        %38 = vector.load %arg6[%c0_23, %c0_24] : memref<8x128xf32, #tpu.memory_space<vmem>>, vector<8x128xf32>
        tpu.vector_store %arg6[%c0_23, %c0_24], %37 {strides = array<i32>} : memref<8x128xf32, #tpu.memory_space<vmem>>, vector<8x128xf32>,
      } else {
      }
      %c0 = arith.constant 0 : index
      %c0_5 = arith.constant 0 : index
      %12 = vector.load %arg3[%c0, %c0_5] : memref<288x128xbf16, #tpu.memory_space<vmem>>, vector<32x128xbf16>
      %c0_6 = arith.constant 0 : index
      %c0_7 = arith.constant 0 : index
      %13 = vector.load %arg2[%c0_6, %c0_7] : memref<16x32xf32, #tpu.memory_space<vmem>>, vector<16x32xf32>
      %14 = arith.truncf %13 : vector<16x32xf32> to vector<16x32xbf16>
      %cst = arith.constant dense<0.000000e+00> : vector<16x128xf32>
      %15 = tpu.matmul %14, %12, %cst {dimension_numbers = #tpu.dot_dimension_numbers<[1], [0], [0], [1], [0, 0, 1, 1], [], []>} : vector<16x32xbf16>, vector<32x128xbf16>, vector<16x128xf32> -> vector<16x128xf32>
      %c0_8 = arith.constant 0 : index
      %c0_9 = arith.constant 0 : index
      %16 = vector.load %arg4[%c0_8, %c0_9] : memref<8x128xf32, #tpu.memory_space<vmem>>, vector<1x128xf32>
      %17 = vector.broadcast %16 : vector<1x128xf32> to vector<16x128xf32>
      %18 = arith.addf %15, %17 : vector<16x128xf32>
      %cst_10 = arith.constant 0.000000e+00 : f32
      %19 = vector.broadcast %cst_10 : f32 to vector<16x128xf32>
      %20 = arith.maximumf %18, %19 : vector<16x128xf32>
      %c0_11 = arith.constant 0 : index
      %c0_12 = arith.constant 0 : index
      %21 = vector.load %arg6[%c0_11, %c0_12] : memref<8x128xf32, #tpu.memory_space<vmem>>, vector<1x128xf32>
      %cst_13 = arith.constant dense<0.000000e+00> : vector<128xf32>
      %22 = vector.multi_reduction <add>, %20, %cst_13 [0] : vector<16x128xf32> to vector<128xf32>
      %23 = vector.shape_cast %22 : vector<128xf32> to vector<1x128xf32>
      %24 = arith.addf %21, %23 : vector<1x128xf32>
      %c0_14 = arith.constant 0 : index
      %c0_15 = arith.constant 0 : index
      %25 = vector.load %arg6[%c0_14, %c0_15] : memref<8x128xf32, #tpu.memory_space<vmem>>, vector<1x128xf32>
      tpu.vector_store %arg6[%c0_14, %c0_15], %24 {strides = array<i32>} : memref<8x128xf32, #tpu.memory_space<vmem>>, vector<1x128xf32>,
      %c1 = arith.constant 1 : index
      %c0_16 = arith.constant 0 : index
      %26 = vector.load %arg6[%c1, %c0_16] : memref<8x128xf32, #tpu.memory_space<vmem>>, vector<1x128xf32>
      %27 = arith.mulf %20, %20 : vector<16x128xf32>
      %cst_17 = arith.constant dense<0.000000e+00> : vector<128xf32>
      %28 = vector.multi_reduction <add>, %27, %cst_17 [0] : vector<16x128xf32> to vector<128xf32>
      %29 = vector.shape_cast %28 : vector<128xf32> to vector<1x128xf32>
      %30 = arith.addf %26, %29 : vector<1x128xf32>
      %c1_18 = arith.constant 1 : index
      %c0_19 = arith.constant 0 : index
      %31 = vector.load %arg6[%c1_18, %c0_19] : memref<8x128xf32, #tpu.memory_space<vmem>>, vector<1x128xf32>
      tpu.vector_store %arg6[%c1_18, %c0_19], %30 {strides = array<i32>} : memref<8x128xf32, #tpu.memory_space<vmem>>, vector<1x128xf32>,
      %32 = arith.truncf %20 : vector<16x128xf32> to vector<16x128xbf16>
      %33 = arith.index_cast %arg1 : i32 to index
      %c0_20 = arith.constant 0 : index
      %c0_21 = arith.constant 0 : index
      %34 = vector.load %arg7[%33, %c0_20, %c0_21] : memref<2x16x128xbf16, #tpu.memory_space<vmem>>, vector<1x16x128xbf16>
      %35 = vector.shape_cast %34 : vector<1x16x128xbf16> to vector<16x128xbf16>
      %36 = vector.shape_cast %32 : vector<16x128xbf16> to vector<1x16x128xbf16>
      tpu.vector_store %arg7[%33, %c0_20, %c0_21], %36 {strides = array<i32>} : memref<2x16x128xbf16, #tpu.memory_space<vmem>>, vector<1x16x128xbf16>,
    } else {
    }
    %c1_i32 = arith.constant 1 : i32
    %3 = arith.cmpi eq, %arg0, %c1_i32 : i32
    %4 = arith.extui %3 : i1 to i32
    %c0_i32_1 = arith.constant 0 : i32
    %5 = arith.cmpi ne, %4, %c0_i32_1 : i32
    scf.if %5 {
      %c32 = arith.constant 32 : index
      %c0 = arith.constant 0 : index
      %9 = vector.load %arg3[%c32, %c0] : memref<288x128xbf16, #tpu.memory_space<vmem>>, vector<128x128xbf16>
      %c0_i32_3 = arith.constant 0 : i32
      %10 = arith.cmpi eq, %arg1, %c0_i32_3 : i32
      %11 = arith.extui %10 : i1 to i32
      %c0_i32_4 = arith.constant 0 : i32
      %12 = arith.cmpi ne, %11, %c0_i32_4 : i32
      scf.if %12 {
        %c0_20 = arith.constant 0 : index
        %c0_21 = arith.constant 0 : index
        %43 = vector.load %arg6[%c0_20, %c0_21] : memref<8x128xf32, #tpu.memory_space<vmem>>, vector<1x128xf32>
        %cst_22 = arith.constant 3.125000e-02 : f32
        %44 = vector.broadcast %cst_22 : f32 to vector<1x128xf32>
        %45 = arith.mulf %43, %44 : vector<1x128xf32>
        %c1 = arith.constant 1 : index
        %c0_23 = arith.constant 0 : index
        %46 = vector.load %arg6[%c1, %c0_23] : memref<8x128xf32, #tpu.memory_space<vmem>>, vector<1x128xf32>
        %cst_24 = arith.constant 3.125000e-02 : f32
        %47 = vector.broadcast %cst_24 : f32 to vector<1x128xf32>
        %48 = arith.mulf %46, %47 : vector<1x128xf32>
        %49 = arith.mulf %45, %45 : vector<1x128xf32>
        %50 = arith.subf %48, %49 : vector<1x128xf32>
        %cst_25 = arith.constant 0.000000e+00 : f32
        %51 = vector.broadcast %cst_25 : f32 to vector<1x128xf32>
        %52 = arith.maximumf %50, %51 : vector<1x128xf32>
        %c1_26 = arith.constant 1 : index
        %c0_27 = arith.constant 0 : index
        %53 = vector.load %arg4[%c1_26, %c0_27] : memref<8x128xf32, #tpu.memory_space<vmem>>, vector<1x128xf32>
        %cst_28 = arith.constant 9.99999974E-6 : f32
        %54 = vector.broadcast %cst_28 : f32 to vector<1x128xf32>
        %55 = arith.addf %52, %54 : vector<1x128xf32>
        %56 = math.rsqrt %55 : vector<1x128xf32>
        %57 = arith.mulf %53, %56 : vector<1x128xf32>
        %c2_29 = arith.constant 2 : index
        %c0_30 = arith.constant 0 : index
        %58 = vector.load %arg4[%c2_29, %c0_30] : memref<8x128xf32, #tpu.memory_space<vmem>>, vector<1x128xf32>
        %59 = arith.mulf %45, %57 : vector<1x128xf32>
        %60 = arith.subf %58, %59 : vector<1x128xf32>
        %61 = arith.truncf %60 : vector<1x128xf32> to vector<1x128xbf16>
        %cst_31 = arith.constant dense<0.000000e+00> : vector<1x128xf32>
        %62 = tpu.matmul %61, %9, %cst_31 {dimension_numbers = #tpu.dot_dimension_numbers<[1], [0], [0], [1], [0, 0, 1, 1], [], []>} : vector<1x128xbf16>, vector<128x128xbf16>, vector<1x128xf32> -> vector<1x128xf32>
        %c3_32 = arith.constant 3 : index
        %c0_33 = arith.constant 0 : index
        %63 = vector.load %arg4[%c3_32, %c0_33] : memref<8x128xf32, #tpu.memory_space<vmem>>, vector<1x128xf32>
        %64 = arith.addf %62, %63 : vector<1x128xf32>
        %c4_34 = arith.constant 4 : index
        %c0_35 = arith.constant 0 : index
        %65 = vector.load %arg6[%c4_34, %c0_35] : memref<8x128xf32, #tpu.memory_space<vmem>>, vector<1x128xf32>
        tpu.vector_store %arg6[%c4_34, %c0_35], %57 {strides = array<i32>} : memref<8x128xf32, #tpu.memory_space<vmem>>, vector<1x128xf32>,
        %c5_36 = arith.constant 5 : index
        %c0_37 = arith.constant 0 : index
        %66 = vector.load %arg6[%c5_36, %c0_37] : memref<8x128xf32, #tpu.memory_space<vmem>>, vector<1x128xf32>
        tpu.vector_store %arg6[%c5_36, %c0_37], %64 {strides = array<i32>} : memref<8x128xf32, #tpu.memory_space<vmem>>, vector<1x128xf32>,
      } else {
      }
      %c4 = arith.constant 4 : index
      %c0_5 = arith.constant 0 : index
      %13 = vector.load %arg6[%c4, %c0_5] : memref<8x128xf32, #tpu.memory_space<vmem>>, vector<1x128xf32>
      %c5 = arith.constant 5 : index
      %c0_6 = arith.constant 0 : index
      %14 = vector.load %arg6[%c5, %c0_6] : memref<8x128xf32, #tpu.memory_space<vmem>>, vector<1x128xf32>
      %15 = arith.index_cast %arg1 : i32 to index
      %c0_7 = arith.constant 0 : index
      %c0_8 = arith.constant 0 : index
      %16 = vector.load %arg7[%15, %c0_7, %c0_8] : memref<2x16x128xbf16, #tpu.memory_space<vmem>>, vector<1x16x128xbf16>
      %17 = vector.shape_cast %16 : vector<1x16x128xbf16> to vector<16x128xbf16>
      %18 = arith.extf %17 : vector<16x128xbf16> to vector<16x128xf32>
      %19 = vector.broadcast %13 : vector<1x128xf32> to vector<16x128xf32>
      %20 = arith.mulf %18, %19 : vector<16x128xf32>
      %21 = arith.truncf %20 : vector<16x128xf32> to vector<16x128xbf16>
      %cst = arith.constant dense<0.000000e+00> : vector<16x128xf32>
      %22 = tpu.matmul %21, %9, %cst {dimension_numbers = #tpu.dot_dimension_numbers<[1], [0], [0], [1], [0, 0, 1, 1], [], []>} : vector<16x128xbf16>, vector<128x128xbf16>, vector<16x128xf32> -> vector<16x128xf32>
      %23 = vector.broadcast %14 : vector<1x128xf32> to vector<16x128xf32>
      %24 = arith.addf %22, %23 : vector<16x128xf32>
      %cst_9 = arith.constant 0.000000e+00 : f32
      %25 = vector.broadcast %cst_9 : f32 to vector<16x128xf32>
      %26 = arith.maximumf %24, %25 : vector<16x128xf32>
      %c2 = arith.constant 2 : index
      %c0_10 = arith.constant 0 : index
      %27 = vector.load %arg6[%c2, %c0_10] : memref<8x128xf32, #tpu.memory_space<vmem>>, vector<1x128xf32>
      %cst_11 = arith.constant dense<0.000000e+00> : vector<128xf32>
      %28 = vector.multi_reduction <add>, %26, %cst_11 [0] : vector<16x128xf32> to vector<128xf32>
      %29 = vector.shape_cast %28 : vector<128xf32> to vector<1x128xf32>
      %30 = arith.addf %27, %29 : vector<1x128xf32>
      %c2_12 = arith.constant 2 : index
      %c0_13 = arith.constant 0 : index
      %31 = vector.load %arg6[%c2_12, %c0_13] : memref<8x128xf32, #tpu.memory_space<vmem>>, vector<1x128xf32>
      tpu.vector_store %arg6[%c2_12, %c0_13], %30 {strides = array<i32>} : memref<8x128xf32, #tpu.memory_space<vmem>>, vector<1x128xf32>,
      %c3 = arith.constant 3 : index
      %c0_14 = arith.constant 0 : index
      %32 = vector.load %arg6[%c3, %c0_14] : memref<8x128xf32, #tpu.memory_space<vmem>>, vector<1x128xf32>
      %33 = arith.mulf %26, %26 : vector<16x128xf32>
      %cst_15 = arith.constant dense<0.000000e+00> : vector<128xf32>
      %34 = vector.multi_reduction <add>, %33, %cst_15 [0] : vector<16x128xf32> to vector<128xf32>
      %35 = vector.shape_cast %34 : vector<128xf32> to vector<1x128xf32>
      %36 = arith.addf %32, %35 : vector<1x128xf32>
      %c3_16 = arith.constant 3 : index
      %c0_17 = arith.constant 0 : index
      %37 = vector.load %arg6[%c3_16, %c0_17] : memref<8x128xf32, #tpu.memory_space<vmem>>, vector<1x128xf32>
      tpu.vector_store %arg6[%c3_16, %c0_17], %36 {strides = array<i32>} : memref<8x128xf32, #tpu.memory_space<vmem>>, vector<1x128xf32>,
      %38 = arith.truncf %26 : vector<16x128xf32> to vector<16x128xbf16>
      %39 = arith.index_cast %arg1 : i32 to index
      %c0_18 = arith.constant 0 : index
      %c0_19 = arith.constant 0 : index
      %40 = vector.load %arg8[%39, %c0_18, %c0_19] : memref<2x16x128xbf16, #tpu.memory_space<vmem>>, vector<1x16x128xbf16>
      %41 = vector.shape_cast %40 : vector<1x16x128xbf16> to vector<16x128xbf16>
      %42 = vector.shape_cast %38 : vector<16x128xbf16> to vector<1x16x128xbf16>
      tpu.vector_store %arg8[%39, %c0_18, %c0_19], %42 {strides = array<i32>} : memref<2x16x128xbf16, #tpu.memory_space<vmem>>, vector<1x16x128xbf16>,
    } else {
    }
    %c2_i32 = arith.constant 2 : i32
    %6 = arith.cmpi eq, %arg0, %c2_i32 : i32
    %7 = arith.extui %6 : i1 to i32
    %c0_i32_2 = arith.constant 0 : i32
    %8 = arith.cmpi ne, %7, %c0_i32_2 : i32
    scf.if %8 {
      %c160 = arith.constant 160 : index
      %c0 = arith.constant 0 : index
      %9 = vector.load %arg3[%c160, %c0] : memref<288x128xbf16, #tpu.memory_space<vmem>>, vector<128x128xbf16>
      %c0_i32_3 = arith.constant 0 : i32
      %10 = arith.cmpi eq, %arg1, %c0_i32_3 : i32
      %11 = arith.extui %10 : i1 to i32
      %c0_i32_4 = arith.constant 0 : i32
      %12 = arith.cmpi ne, %11, %c0_i32_4 : i32
      scf.if %12 {
        %c2 = arith.constant 2 : index
        %c0_13 = arith.constant 0 : index
        %36 = vector.load %arg6[%c2, %c0_13] : memref<8x128xf32, #tpu.memory_space<vmem>>, vector<1x128xf32>
        %cst_14 = arith.constant 3.125000e-02 : f32
        %37 = vector.broadcast %cst_14 : f32 to vector<1x128xf32>
        %38 = arith.mulf %36, %37 : vector<1x128xf32>
        %c3 = arith.constant 3 : index
        %c0_15 = arith.constant 0 : index
        %39 = vector.load %arg6[%c3, %c0_15] : memref<8x128xf32, #tpu.memory_space<vmem>>, vector<1x128xf32>
        %cst_16 = arith.constant 3.125000e-02 : f32
        %40 = vector.broadcast %cst_16 : f32 to vector<1x128xf32>
        %41 = arith.mulf %39, %40 : vector<1x128xf32>
        %42 = arith.mulf %38, %38 : vector<1x128xf32>
        %43 = arith.subf %41, %42 : vector<1x128xf32>
        %cst_17 = arith.constant 0.000000e+00 : f32
        %44 = vector.broadcast %cst_17 : f32 to vector<1x128xf32>
        %45 = arith.maximumf %43, %44 : vector<1x128xf32>
        %c4 = arith.constant 4 : index
        %c0_18 = arith.constant 0 : index
        %46 = vector.load %arg4[%c4, %c0_18] : memref<8x128xf32, #tpu.memory_space<vmem>>, vector<1x128xf32>
        %cst_19 = arith.constant 9.99999974E-6 : f32
        %47 = vector.broadcast %cst_19 : f32 to vector<1x128xf32>
        %48 = arith.addf %45, %47 : vector<1x128xf32>
        %49 = math.rsqrt %48 : vector<1x128xf32>
        %50 = arith.mulf %46, %49 : vector<1x128xf32>
        %c5 = arith.constant 5 : index
        %c0_20 = arith.constant 0 : index
        %51 = vector.load %arg4[%c5, %c0_20] : memref<8x128xf32, #tpu.memory_space<vmem>>, vector<1x128xf32>
        %52 = arith.mulf %38, %50 : vector<1x128xf32>
        %53 = arith.subf %51, %52 : vector<1x128xf32>
        %54 = arith.truncf %53 : vector<1x128xf32> to vector<1x128xbf16>
        %cst_21 = arith.constant dense<0.000000e+00> : vector<1x128xf32>
        %55 = tpu.matmul %54, %9, %cst_21 {dimension_numbers = #tpu.dot_dimension_numbers<[1], [0], [0], [1], [0, 0, 1, 1], [], []>} : vector<1x128xbf16>, vector<128x128xbf16>, vector<1x128xf32> -> vector<1x128xf32>
        %c6_22 = arith.constant 6 : index
        %c0_23 = arith.constant 0 : index
        %56 = vector.load %arg4[%c6_22, %c0_23] : memref<8x128xf32, #tpu.memory_space<vmem>>, vector<1x128xf32>
        %57 = arith.addf %55, %56 : vector<1x128xf32>
        %c6_24 = arith.constant 6 : index
        %c0_25 = arith.constant 0 : index
        %58 = vector.load %arg6[%c6_24, %c0_25] : memref<8x128xf32, #tpu.memory_space<vmem>>, vector<1x128xf32>
        tpu.vector_store %arg6[%c6_24, %c0_25], %50 {strides = array<i32>} : memref<8x128xf32, #tpu.memory_space<vmem>>, vector<1x128xf32>,
        %c7_26 = arith.constant 7 : index
        %c0_27 = arith.constant 0 : index
        %59 = vector.load %arg6[%c7_26, %c0_27] : memref<8x128xf32, #tpu.memory_space<vmem>>, vector<1x128xf32>
        tpu.vector_store %arg6[%c7_26, %c0_27], %57 {strides = array<i32>} : memref<8x128xf32, #tpu.memory_space<vmem>>, vector<1x128xf32>,
      } else {
      }
      %c6 = arith.constant 6 : index
      %c0_5 = arith.constant 0 : index
      %13 = vector.load %arg6[%c6, %c0_5] : memref<8x128xf32, #tpu.memory_space<vmem>>, vector<1x128xf32>
      %c7 = arith.constant 7 : index
      %c0_6 = arith.constant 0 : index
      %14 = vector.load %arg6[%c7, %c0_6] : memref<8x128xf32, #tpu.memory_space<vmem>>, vector<1x128xf32>
      %15 = arith.index_cast %arg1 : i32 to index
      %c0_7 = arith.constant 0 : index
      %c0_8 = arith.constant 0 : index
      %16 = vector.load %arg8[%15, %c0_7, %c0_8] : memref<2x16x128xbf16, #tpu.memory_space<vmem>>, vector<1x16x128xbf16>
      %17 = vector.shape_cast %16 : vector<1x16x128xbf16> to vector<16x128xbf16>
      %18 = arith.extf %17 : vector<16x128xbf16> to vector<16x128xf32>
      %19 = vector.broadcast %13 : vector<1x128xf32> to vector<16x128xf32>
      %20 = arith.mulf %18, %19 : vector<16x128xf32>
      %21 = arith.truncf %20 : vector<16x128xf32> to vector<16x128xbf16>
      %cst = arith.constant dense<0.000000e+00> : vector<16x128xf32>
      %22 = tpu.matmul %21, %9, %cst {dimension_numbers = #tpu.dot_dimension_numbers<[1], [0], [0], [1], [0, 0, 1, 1], [], []>} : vector<16x128xbf16>, vector<128x128xbf16>, vector<16x128xf32> -> vector<16x128xf32>
      %23 = vector.broadcast %14 : vector<1x128xf32> to vector<16x128xf32>
      %24 = arith.addf %22, %23 : vector<16x128xf32>
      %cst_9 = arith.constant dense<0xFF800000> : vector<16xf32>
      %25 = vector.multi_reduction <maximumf>, %24, %cst_9 [1] : vector<16x128xf32> to vector<16xf32>
      %26 = vector.shape_cast %25 : vector<16xf32> to vector<16x1xf32>
      %27 = vector.broadcast %26 : vector<16x1xf32> to vector<16x128xf32>
      %28 = arith.subf %24, %27 : vector<16x128xf32>
      %29 = math.exp %28 : vector<16x128xf32>
      %cst_10 = arith.constant dense<0.000000e+00> : vector<16xf32>
      %30 = vector.multi_reduction <add>, %29, %cst_10 [1] : vector<16x128xf32> to vector<16xf32>
      %31 = vector.shape_cast %30 : vector<16xf32> to vector<16x1xf32>
      %32 = tpu.reciprocal %31 : vector<16x1xf32> -> vector<16x1xf32>
      %33 = vector.broadcast %32 : vector<16x1xf32> to vector<16x128xf32>
      %34 = arith.mulf %29, %33 : vector<16x128xf32>
      %c0_11 = arith.constant 0 : index
      %c0_12 = arith.constant 0 : index
      %35 = vector.load %arg5[%c0_11, %c0_12] : memref<16x128xf32, #tpu.memory_space<vmem>>, vector<16x128xf32>
      tpu.vector_store %arg5[%c0_11, %c0_12], %34 {strides = array<i32>} : memref<16x128xf32, #tpu.memory_space<vmem>>, vector<16x128xf32>,
    } else {
    }
    return
  }
  func.func @transform_0(%arg0: i32, %arg1: i32) -> (i32, i32) {
    %c0_i32 = arith.constant 0 : i32
    %0 = arith.cmpi eq, %arg0, %c0_i32 : i32
    %c1_i32 = arith.constant 1 : i32
    %1 = arith.select %0, %arg1, %c1_i32 : i32
    %c0_i32_0 = arith.constant 0 : i32
    %c0_i32_1 = arith.constant 0 : i32
    return %1, %c0_i32_0 : i32, i32
  }
  func.func @transform_1(%arg0: i32, %arg1: i32) -> (i32, i32) {
    %c0_i32 = arith.constant 0 : i32
    %c0_i32_0 = arith.constant 0 : i32
    %c0_i32_1 = arith.constant 0 : i32
    return %c0_i32, %c0_i32_0 : i32, i32
  }
  func.func @transform_2(%arg0: i32, %arg1: i32) -> (i32, i32) {
    %c0_i32 = arith.constant 0 : i32
    %c0_i32_0 = arith.constant 0 : i32
    %c0_i32_1 = arith.constant 0 : i32
    return %c0_i32, %c0_i32_0 : i32, i32
  }
  func.func @transform_3(%arg0: i32, %arg1: i32) -> (i32, i32) {
    %c2_i32 = arith.constant 2 : i32
    %0 = arith.cmpi eq, %arg0, %c2_i32 : i32
    %c0_i32 = arith.constant 0 : i32
    %1 = arith.select %0, %arg1, %c0_i32 : i32
    %c0_i32_0 = arith.constant 0 : i32
    %c0_i32_1 = arith.constant 0 : i32
    return %1, %c0_i32_0 : i32, i32
  }
}

</mosaic_0001>

<llo_original>
// kernel: classifier_forward.1
$region0: #{classifier_forward.1}
  #allocation0 [shape = 'u32[]', space=smem, size = 0x4, offset = 0x4, fixed_abs, tag = 'smem constant byte address 0x4 - core index']
  #allocation1 [shape = 'u32[144,128]{1,0:T(1,128)}', space=vmem, size = 0x12000, scoped, tag = 'internal scratch']
  #allocation2 [shape = 'f32[8,128]{1,0:T(8,128)}', space=vmem, size = 0x1000, scoped, tag = 'scratch operand']
  #allocation3 [shape = 'bf16[2,16,128]{2,1,0:T(8,128)(2,1)}', space=vmem, size = 0x2000, scoped, tag = 'scratch operand']
  #allocation4 [shape = 'bf16[2,16,128]{2,1,0:T(8,128)(2,1)}', space=vmem, size = 0x2000, scoped, tag = 'scratch operand']
  %s0 = inlined_call_operand.hbm [shape: f32[32,32], index: 0, kind: input, shape index: {}]
  %s1 = inlined_call_operand.hbm [shape: bf16[288,128], index: 1, kind: input, shape index: {}]
  %s2 = inlined_call_operand.hbm [shape: f32[8,128], index: 2, kind: input, shape index: {}]
  %s3 = inlined_call_operand.vmem [shape: f32[32,128], index: 3, kind: output, shape index: {}]
  %s4 = sld [smem:[#allocation0]]
  $region81: #{classifier_forward.1} parent=0
    _
  %s6 = ssub.s32 1, %s4
  %s7 = scalar_select 0, %s6, %s4
  $region1: #{classifier_forward.1} parent=0
    #allocation5 [shape = 'u8[16384]{0}', space=vmem, size = 0x4000, scoped, tag = 'input window, operand 0']
    #allocation6 [shape = 's32[2]{0}', space=sflag, size = 0x8, scoped, tag = 'scoped memory for classifier_forward.1']
    #allocation7 [shape = 'u8[73728]{0}', space=vmem, size = 0x12000, scoped, tag = 'input window, operand 1, single buffered']
    #allocation8 [shape = 's32[1]{0}', space=sflag, size = 0x4, scoped, tag = 'scoped memory for classifier_forward.1']
    #allocation9 [shape = 'u8[4096]{0}', space=vmem, size = 0x1000, scoped, tag = 'input window, operand 2, single buffered']
    %8 = vsyncpa [#allocation6], 0
    %s9 = scalar_lea.sflag [#allocation6], 1
    %10 = vsyncpa %s9, 0
    %11 = vsyncpa [#allocation8], 0
    loop: start=0, step=1, limit=8
    $region2: #{classifier_forward.1} parent=1 // loop_pre_header
      _
    $region3: #{classifier_forward.1} parent=1 // loop_header
      %s13 = sphi 0, %s17
      %p14 = scmp.ge.s32.totalorder %s13, 8
      %s20 = sphi 0, %s32
      %s21 = sphi 0, %s28
      %s22 = sphi 0, %s20
      %s23 = sphi 0, %s21
      %s24 = sphi 0, %s22
      %s25 = sphi 0, %s23
      %s39 = sphi 0, %s41
      %s42 = sphi 0, %s39
      %s43 = sphi 0, %s42
      %s59 = sphi 0, %s43
      %s63 = sphi 0, %s63
      %s65 = sphi 0, %s63
      %s66 = sphi 0, %s65
      %s80 = sphi 0, %s66
      %s84 = sphi 0, %s84
      %s86 = sphi 0, %s84
      %s87 = sphi 0, %s86
      %s101 = sphi 0, %s87
      %s111 = sphi 0, %s113
      %s114 = sphi 0, %s111
      %s115 = sphi 0, %s114
      %s131 = sphi 0, %s115
    $region4: #{classifier_forward.1} parent=1 // loop_header_branch
      %16 = sbr.rel (%p14) target = $region8
    $region5: #{classifier_forward.1} parent=1 // loop_body
      %s18 = ssub.s32 %s13, 1
      %s19 = ssub.s32 %s13, 2
      %s26 = sadd.s32 1, %s21
      %p27 = scmp.ge.s32.totalorder %s26, 2
      %s28 = scalar_select %p27, 0, %s26
      %s29 = sadd.s32 1, %s20
      %s30 = scalar_select %p27, %s29, %s20
      %p31 = scmp.ge.s32.totalorder %s30, 3
      %s32 = scalar_select %p31, 0, %s30
      %p33 = scmp.eq.s32.totalorder %s20, 0
      %s34 = scalar_select %p33, %s21, 1
      %p35 = scmp.eq.s32.totalorder %s32, 0
      %s36 = scalar_select %p35, %s28, 1
      %s37 = ssub.s32 %s34, %s36
      %p38 = scmp.eq.s32.totalorder %s37, 0
      %s40 = sadd.s32 %s39, 1
      %s41 = scalar_select %p38, %s39, %s40
      %p44 = pneg %p38
      %p45 = scmp.eq.s32.totalorder %s13, 5
      %p46 = por %p44, %p45
      %p47 = scmp.ne.s32.totalorder %s39, %s42
      %p48 = scmp.eq.s32.totalorder %s13, 0
      %p49 = por %p47, %p48
      %p50 = scmp.ne.s32.totalorder %s39, %s42
      %p51 = scmp.eq.s32.totalorder %s18, 5
      %p52 = por %p50, %p51
      %p53 = scmp.ne.s32.totalorder %s42, %s43
      %p54 = scmp.eq.s32.totalorder %s18, 0
      %p55 = por %p53, %p54
      %p56 = scmp.ne.s32.totalorder %s42, %s43
      %p57 = scmp.eq.s32.totalorder %s19, 5
      %p58 = por %p56, %p57
      %p60 = scmp.ne.s32.totalorder %s43, %s59
      %p61 = scmp.eq.s32.totalorder %s19, 0
      %p62 = por %p60, %p61
      %s64 = sadd.s32 %s63, 1
      %p67 = scmp.eq.s32.totalorder %s13, 5
      %p68 = scmp.ne.s32.totalorder %s63, %s65
      %p69 = scmp.eq.s32.totalorder %s13, 0
      %p70 = por %p68, %p69
      %p71 = scmp.ne.s32.totalorder %s63, %s65
      %p72 = scmp.eq.s32.totalorder %s18, 5
      %p73 = por %p71, %p72
      %p74 = scmp.ne.s32.totalorder %s65, %s66
      %p75 = scmp.eq.s32.totalorder %s18, 0
      %p76 = por %p74, %p75
      %p77 = scmp.ne.s32.totalorder %s65, %s66
      %p78 = scmp.eq.s32.totalorder %s19, 5
      %p79 = por %p77, %p78
      %p81 = scmp.ne.s32.totalorder %s66, %s80
      %p82 = scmp.eq.s32.totalorder %s19, 0
      %p83 = por %p81, %p82
      %s85 = sadd.s32 %s84, 1
      %p88 = scmp.eq.s32.totalorder %s13, 5
      %p89 = scmp.ne.s32.totalorder %s84, %s86
      %p90 = scmp.eq.s32.totalorder %s13, 0
      %p91 = por %p89, %p90
      %p92 = scmp.ne.s32.totalorder %s84, %s86
      %p93 = scmp.eq.s32.totalorder %s18, 5
      %p94 = por %p92, %p93
      %p95 = scmp.ne.s32.totalorder %s86, %s87
      %p96 = scmp.eq.s32.totalorder %s18, 0
      %p97 = por %p95, %p96
      %p98 = scmp.ne.s32.totalorder %s86, %s87
      %p99 = scmp.eq.s32.totalorder %s19, 5
      %p100 = por %p98, %p99
      %p102 = scmp.ne.s32.totalorder %s87, %s101
      %p103 = scmp.eq.s32.totalorder %s19, 0
      %p104 = por %p102, %p103
      %p105 = scmp.eq.s32.totalorder %s20, 2
      %s106 = scalar_select %p105, %s21, 0
      %p107 = scmp.eq.s32.totalorder %s32, 2
      %s108 = scalar_select %p107, %s28, 0
      %s109 = ssub.s32 %s106, %s108
      %p110 = scmp.eq.s32.totalorder %s109, 0
      %s112 = sadd.s32 %s111, 1
      %s113 = scalar_select %p110, %s111, %s112
      %p116 = pneg %p110
      %p117 = scmp.eq.s32.totalorder %s13, 5
      %p118 = por %p116, %p117
      %p119 = scmp.ne.s32.totalorder %s111, %s114
      %p120 = scmp.eq.s32.totalorder %s13, 0
      %p121 = por %p119, %p120
      %p122 = scmp.ne.s32.totalorder %s111, %s114
      %p123 = scmp.eq.s32.totalorder %s18, 5
      %p124 = por %p122, %p123
      %p125 = scmp.ne.s32.totalorder %s114, %s115
      %p126 = scmp.eq.s32.totalorder %s18, 0
      %p127 = por %p125, %p126
      %p128 = scmp.ne.s32.totalorder %s114, %s115
      %p129 = scmp.eq.s32.totalorder %s19, 5
      %p130 = por %p128, %p129
      %p132 = scmp.ne.s32.totalorder %s115, %s131
      %p133 = scmp.eq.s32.totalorder %s19, 0
      %p134 = por %p132, %p133
      %p135 = scmp.le.s32.totalorder 1, %s13
      %p136 = scmp.lt.s32.totalorder %s13, 7
      %p137 = pnand %p135, %p136
      %p138 = pneg %p137
      // Predicated region
      $region9: #{classifier_forward.1} parent=5 // pred_check
        _
      $region10: #{classifier_forward.1} parent=5 // pred_check_branch
        %140 = sbr.rel (%p137) target = $region12
      $region11: #{classifier_forward.1} parent=5 // pred_region
        %s141 = ssub.s32 %s13, 1
        // Predicated region
        $region13: #{classifier_forward.1} parent=11 // pred_check
          %p142 = pneg %p76
        $region14: #{classifier_forward.1} parent=11 // pred_check_branch
          %144 = sbr.rel (%p142) target = $region16
        $region15: #{classifier_forward.1} parent=11 // pred_region
          %s146 = ssub.s32 2304, 2304
          %147 = vsyncadd [#allocation8], %s146
          %s148 = sshll.u32 [#allocation7], 4
          %s149 = int_to_ptr.vmem [resolvable:$true] %s148
          %154 = dma.hbm_to_vmem [thread:$0]  %s1, 2304, %s149, [#allocation8], 64, 64, 4
        $region16: #{classifier_forward.1} parent=11 // pred_fallthru
          _
        // Predicated region
        $region17: #{classifier_forward.1} parent=11 // pred_check
          %p155 = pneg %p97
        $region18: #{classifier_forward.1} parent=11 // pred_check_branch
          %157 = sbr.rel (%p155) target = $region20
        $region19: #{classifier_forward.1} parent=11 // pred_region
          %s159 = ssub.s32 128, 128
          %160 = vsyncadd [#allocation8], %s159
          %s162 = sshll.u32 [#allocation9], 4
          %s163 = int_to_ptr.vmem [resolvable:$true] %s162
          %165 = dma.hbm_to_vmem [thread:$0]  %s2, 128, %s163, [#allocation8]
        $region20: #{classifier_forward.1} parent=11 // pred_fallthru
          _
      $region12: #{classifier_forward.1} parent=5 // pred_fallthru
        _
      %p166 = scmp.lt.s32.totalorder %s13, 6
      // Predicated region
      $region21: #{classifier_forward.1} parent=5 // pred_check
        %p167 = pneg %p166
      $region22: #{classifier_forward.1} parent=5 // pred_check_branch
        %169 = sbr.rel (%p167) target = $region24
      $region23: #{classifier_forward.1} parent=5 // pred_region
        // Predicated region
        $region25: #{classifier_forward.1} parent=23 // pred_check
          %p170 = pneg %p49
        $region26: #{classifier_forward.1} parent=23 // pred_check_branch
          %172 = sbr.rel (%p170) target = $region28
        $region27: #{classifier_forward.1} parent=23 // pred_region
          %s173 = sand.u32 %s39, 1
          %s174 = scalar_lea.sflag [#allocation6], %s173
          %s175 = sand.u32 %s39, 1
          %s176 = smul.addr %s175, 16
          %s177 = scalar_lea.vmem [#allocation5], %s176
          %p178 = scmp.eq.s32.totalorder %s20, 0
          %s179 = scalar_select %p178, %s21, 1
          %s180 = smul.u32 2, %s179
          %s182 = ssub.s32 256, 256
          %183 = vsyncadd %s174, %s182
          %s184 = smul.addr %s180, 128
          %s185 = scalar_lea.hbm %s0, %s184
          %s186 = sshll.u32 %s177, 4
          %s187 = int_to_ptr.vmem [resolvable:$true] %s186
          %192 = dma.hbm_to_vmem [thread:$0]  %s185, 256, %s187, %s174, 128, 128, 8
        $region28: #{classifier_forward.1} parent=23 // pred_fallthru
          _
      $region24: #{classifier_forward.1} parent=5 // pred_fallthru
        _
      %p193 = scmp.le.s32.totalorder 1, %s13
      %p194 = scmp.lt.s32.totalorder %s13, 7
      %p195 = pnand %p193, %p194
      %p196 = pneg %p195
      // Predicated region
      $region29: #{classifier_forward.1} parent=5 // pred_check
        _
      $region30: #{classifier_forward.1} parent=5 // pred_check_branch
        %198 = sbr.rel (%p195) target = $region32
      $region31: #{classifier_forward.1} parent=5 // pred_region
        %s199 = ssub.s32 %s13, 1
        %s200 = sand.u32 %s42, 1
        %s201 = scalar_lea.sflag [#allocation6], %s200
        %s202 = sand.u32 %s42, 1
        %s203 = smul.addr %s202, 16
        %s204 = scalar_lea.vmem [#allocation5], %s203
        // Predicated region
        $region33: #{classifier_forward.1} parent=31 // pred_check
          %p205 = pneg %p55
        $region34: #{classifier_forward.1} parent=31 // pred_check_branch
          %207 = sbr.rel (%p205) target = $region36
        $region35: #{classifier_forward.1} parent=31 // pred_region
          %208 = dma.done %s201, 256
        $region36: #{classifier_forward.1} parent=31 // pred_fallthru
          _
        // Predicated region
        $region37: #{classifier_forward.1} parent=31 // pred_check
          %p209 = pneg %p76
        $region38: #{classifier_forward.1} parent=31 // pred_check_branch
          %211 = sbr.rel (%p209) target = $region40
        $region39: #{classifier_forward.1} parent=31 // pred_region
          %212 = dma.done [#allocation8], 2304
        $region40: #{classifier_forward.1} parent=31 // pred_fallthru
          _
        // Predicated region
        $region41: #{classifier_forward.1} parent=31 // pred_check
          %p213 = pneg %p97
        $region42: #{classifier_forward.1} parent=31 // pred_check_branch
          %215 = sbr.rel (%p213) target = $region44
        $region43: #{classifier_forward.1} parent=31 // pred_region
          %216 = dma.done [#allocation8], 128
        $region44: #{classifier_forward.1} parent=31 // pred_fallthru
          _
        %s217 = sand.u32 %s42, 1
        %s218 = scalar_lea.sflag [#allocation6], %s217
        %s219 = sand.u32 %s42, 1
        %s220 = smul.addr %s219, 16
        %s221 = scalar_lea.vmem [#allocation5], %s220
        %p222 = pneg %p55
        %p223 = pneg %p52
        %p224 = pneg %p76
        %p225 = pneg %p73
        %p226 = pneg %p97
        %p227 = pneg %p94
        %p228 = pneg %p127
        %p229 = pneg %p124
        %p230 = scmp.eq.s32.totalorder %s22, 2
        %s231 = scalar_select %p230, %s23, 0
        %s232 = smul.u32 2, %s231
        %p233 = scmp.lt.s32.totalorder %s232, 3
        %s234 = scalar_select %p233, %s232, 3
        %s235 = smul.addr %s234, 8
        %s236 = scalar_lea.vmem %s3, %s235
        %p237 = scmp.eq.s32.totalorder %s22, 0
        %s238 = scalar_select %p237, %s23, 1
        %s239 = smul.u32 2, %s238
        %p240 = scmp.eq.s32.totalorder %s22, 2
        %s241 = scalar_select %p240, %s23, 0
        %s242 = smul.u32 2, %s241
        %p243 = scmp.lt.s32.totalorder %s242, 3
        %s244 = scalar_select %p243, %s242, 3
        %s245 = smul.addr %s244, 8
        %s246 = scalar_lea.vmem %s3, %s245
        %p247 = scmp.eq.s32.totalorder %s22, 2
        %s248 = scalar_select %p247, %s23, 0
        %s249 = smul.u32 2, %s248
        %p251 = scmp.eq.s32.totalorder %s22, 0
        // Predicated region
        $region45: #{classifier_forward.1} parent=31 // pred_check
          %p252 = pneg %p251
        $region46: #{classifier_forward.1} parent=31 // pred_check_branch
          %254 = sbr.rel (%p252) target = $region48
        $region47: #{classifier_forward.1} parent=31 // pred_region
          %p255 = scmp.eq.s32.totalorder %s23, 0
          // Predicated region
          $region49: #{classifier_forward.1} parent=47 // pred_check
            %p256 = pneg %p255
          $region50: #{classifier_forward.1} parent=47 // pred_check_branch
            %258 = sbr.rel (%p256) target = $region52
          $region51: #{classifier_forward.1} parent=47 // pred_region
            %259 = vst [vmem:[#allocation2] sm:$0xff] 0.0
          $region52: #{classifier_forward.1} parent=47 // pred_fallthru
            _
          %v260 = vld [vmem:[#allocation7] sm:$0xf]
          %v261 = vld [vmem:[#allocation7 + $0x4] sm:$0xf]
          %v262 = vld [vmem:[#allocation7 + $0x8] sm:$0xf]
          %v263 = vld [vmem:[#allocation7 + $0xc] sm:$0xf]
          %v264 = vld [vmem:[%s204] sm:$0xff]
          %v265 = vld [vmem:[%s204 + $0x8] sm:$0xff]
          %v266 = vpack.c.bf16 %v265, %v264
          %v267 = vld [vmem:[#allocation9] sm:$0x1]
          %v268 = vlaneseq
          %v269 = vshrl.u32 %v268, 7
          %v270 = vsub.s32 0, %v269
          %v271 = vrot.slane %v267, %v270
          %v276 = vunpack.c.l.b16 %v260
          %v277 = vunpack.c.l.b16 %v261
          %v278 = vunpack.c.l.b16 %v262
          %v279 = vunpack.c.l.b16 %v263
          %v280 = vpack.c.b16 %v277, %v276
          %v281 = vpack.c.b16 %v279, %v278
          %vm284 = vcmask 261120
          %v286 = vsel %vm284, %v266, 0
          %288 = vmatprep.subr.bf16.mxu0 0
          %289 = vmatpush1.bf16.msra.mxu0 0
          %290 = vmatprep.subr.bf16.mxu0 0
          %291 = vmatpush1.bf16.msra.mxu0 0
          %292 = vmatprep.subr.bf16.mxu0 0
          %293 = vmatpush1.bf16.msra.mxu0 0
          %294 = vmatprep.subr.bf16.mxu0 0
          %295 = vmatpush1.bf16.msra.mxu0 0
          %296 = vmatprep.subr.bf16.mxu0 0
          %297 = vmatpush1.bf16.msra.mxu0 0
          %298 = vmatprep.subr.bf16.mxu0 0
          %299 = vmatpush1.bf16.msra.mxu0 0
          %300 = vmatprep.subr.bf16.mxu0 0
          %301 = vmatpush1.bf16.msra.mxu0 %v281
          %302 = vmatprep.subr.bf16.mxu0 0
          %303 = vmatpush1.bf16.msra.mxu0 %v280
          %304 = vmatprep.subr.bf16.mxu0 0
          %305 = vmatpush2.bf16.msra.mxu0 0
          %306 = vmatprep.subr.bf16.mxu0 0
          %307 = vmatpush2.bf16.msra.mxu0 0
          %308 = vmatprep.subr.bf16.mxu0 0
          %309 = vmatpush2.bf16.msra.mxu0 0
          %310 = vmatprep.subr.bf16.mxu0 0
          %311 = vmatpush2.bf16.msra.mxu0 0
          %312 = vmatprep.subr.bf16.mxu0 0
          %313 = vmatpush2.bf16.msra.mxu0 0
          %314 = vmatprep.subr.bf16.mxu0 0
          %315 = vmatpush2.bf16.msra.mxu0 0
          %316 = vmatprep.subr.bf16.mxu0 0
          %317 = vmatpush2.bf16.msra.mxu0 0
          %318 = vmatprep.subr.bf16.mxu0 0
          %319 = vmatpush2.bf16.msra.mxu0 0
          %320 = vmatprep.mubr.bf16.mxu0 0
          %321 = vmatmul.mubr.bf16.gmra.mxu0 %v286
          %v322 = vpop.f32.mrf.mxu0
          %v323 = vadd.f32 %v271, %v322
          %v324 = vpop.f32.mrf.mxu0
          %v325 = vpop.f32.mrf.mxu0
          %v326 = vadd.f32 %v271, %v325
          %v327 = vpop.f32.mrf.mxu0
          %328 = vdwg.mxu0
          %v329 = vmax.f32 %v323, 0.0
          %v330 = vmax.f32 %v326, 0.0
          %v331 = vld [vmem:[#allocation2] sm:$0x1]
          %v332 = vadd.f32 %v329, %v330
          %v333 = vrot.slane %v332, 4
          %v334 = vadd.f32 %v332, %v333
          %v335 = vrot.slane %v334, 2
          %v336 = vadd.f32 %v334, %v335
          %v337 = vrot.slane %v336, 1
          %v338 = vadd.f32 %v336, %v337
          %v339 = vadd.f32 %v331, %v338
          %340 = vst [vmem:[#allocation2] sm:$0x1] %v339
          %v341 = vld [vmem:[#allocation2 + $0x1] sm:$0x1]
          %v342 = vmul.f32 %v329, %v329
          %v343 = vmul.f32 %v330, %v330
          %v344 = vadd.f32 %v342, %v343
          %v345 = vrot.slane %v344, 4
          %v346 = vadd.f32 %v344, %v345
          %v347 = vrot.slane %v346, 2
          %v348 = vadd.f32 %v346, %v347
          %v349 = vrot.slane %v348, 1
          %v350 = vadd.f32 %v348, %v349
          %v351 = vadd.f32 %v341, %v350
          %352 = vst [vmem:[#allocation2 + $0x1] sm:$0x1] %v351
          %v353 = vpack.c.bf16 %v330, %v329
          %v355 = vunpack.c.l.b16 %v353
          %v356 = vunpack.c.h.b16 %v353
          %v357 = vpack.c.b16 %v355, %v355
          %v358 = vpack.c.b16 %v356, %v356
          %s361 = smul.u32 %s23, 2
          %s362 = smul.addr %s361, 4
          %s363 = scalar_lea.vmem [#allocation3], %s362
          %364 = vst [vmem:[%s363] sm:$0xf] %v357
          %365 = vst [vmem:[%s363 + $0x4] sm:$0xf] %v358
        $region48: #{classifier_forward.1} parent=31 // pred_fallthru
          _
        %p366 = scmp.eq.s32.totalorder %s22, 1
        // Predicated region
        $region53: #{classifier_forward.1} parent=31 // pred_check
          %p367 = pneg %p366
        $region54: #{classifier_forward.1} parent=31 // pred_check_branch
          %369 = sbr.rel (%p367) target = $region56
        $region55: #{classifier_forward.1} parent=31 // pred_region
          %v370 = vld [vmem:[#allocation7 + $0x10] sm:$0xf]
          %v371 = vld [vmem:[#allocation7 + $0x14] sm:$0xf]
          %v372 = vld [vmem:[#allocation7 + $0x18] sm:$0xf]
          %v373 = vld [vmem:[#allocation7 + $0x1c] sm:$0xf]
          %v374 = vld [vmem:[#allocation7 + $0x20] sm:$0xf]
          %v375 = vld [vmem:[#allocation7 + $0x24] sm:$0xf]
          %v376 = vld [vmem:[#allocation7 + $0x28] sm:$0xf]
          %v377 = vld [vmem:[#allocation7 + $0x2c] sm:$0xf]
          %v378 = vld [vmem:[#allocation7 + $0x30] sm:$0xf]
          %v379 = vld [vmem:[#allocation7 + $0x34] sm:$0xf]
          %v380 = vld [vmem:[#allocation7 + $0x38] sm:$0xf]
          %v381 = vld [vmem:[#allocation7 + $0x3c] sm:$0xf]
          %v382 = vld [vmem:[#allocation7 + $0x40] sm:$0xf]
          %v383 = vld [vmem:[#allocation7 + $0x44] sm:$0xf]
          %v384 = vld [vmem:[#allocation7 + $0x48] sm:$0xf]
          %v385 = vld [vmem:[#allocation7 + $0x4c] sm:$0xf]
          %p386 = scmp.eq.s32.totalorder %s23, 0
          // Predicated region
          $region57: #{classifier_forward.1} parent=55 // pred_check
            %p387 = pneg %p386
          $region58: #{classifier_forward.1} parent=55 // pred_check_branch
            %389 = sbr.rel (%p387) target = $region60
          $region59: #{classifier_forward.1} parent=55 // pred_region
            %v390 = vld [vmem:[#allocation2] sm:$0x1]
            %v391 = vmul.f32 %v390, 0.03125
            %v392 = vld [vmem:[#allocation2 + $0x1] sm:$0x1]
            %v393 = vmul.f32 %v392, 0.03125
            %v394 = vmul.f32 %v391, %v391
            %v395 = vsub.f32 %v393, %v394
            %v396 = vmax.f32 %v395, 0.0
            %v397 = vld [vmem:[#allocation9 + $0x1] sm:$0x1]
            %v398 = vadd.f32 %v396, 1e-05
            %v399 = vrsqrt.pop %v398
            %v400 = vmul.f32 %v397, %v399
            %v401 = vld [vmem:[#allocation9 + $0x2] sm:$0x1]
            %v402 = vmul.f32 %v391, %v400
            %v403 = vsub.f32 %v401, %v402
            %v404 = vpack.c.bf16 %v403, %v403
            %v405 = vld [vmem:[#allocation9 + $0x3] sm:$0x1]
            %v422 = vunpack.c.l.b16 %v370
            %v423 = vunpack.c.l.b16 %v371
            %v424 = vunpack.c.l.b16 %v372
            %v425 = vunpack.c.l.b16 %v373
            %v426 = vunpack.c.l.b16 %v374
            %v427 = vunpack.c.l.b16 %v375
            %v428 = vunpack.c.l.b16 %v376
            %v429 = vunpack.c.l.b16 %v377
            %v430 = vunpack.c.l.b16 %v378
            %v431 = vunpack.c.l.b16 %v379
            %v432 = vunpack.c.l.b16 %v380
            %v433 = vunpack.c.l.b16 %v381
            %v434 = vunpack.c.l.b16 %v382
            %v435 = vunpack.c.l.b16 %v383
            %v436 = vunpack.c.l.b16 %v384
            %v437 = vunpack.c.l.b16 %v385
            %v438 = vpack.c.b16 %v423, %v422
            %v439 = vpack.c.b16 %v425, %v424
            %v440 = vpack.c.b16 %v427, %v426
            %v441 = vpack.c.b16 %v429, %v428
            %v442 = vpack.c.b16 %v431, %v430
            %v443 = vpack.c.b16 %v433, %v432
            %v444 = vpack.c.b16 %v435, %v434
            %v445 = vpack.c.b16 %v437, %v436
            %454 = vmatprep.subr.bf16.mxu0 0
            %455 = vmatpush1.bf16.msra.mxu0 %v445
            %456 = vmatprep.subr.bf16.mxu0 0
            %457 = vmatpush1.bf16.msra.mxu0 %v444
            %458 = vmatprep.subr.bf16.mxu0 0
            %459 = vmatpush1.bf16.msra.mxu0 %v443
            %460 = vmatprep.subr.bf16.mxu0 0
            %461 = vmatpush1.bf16.msra.mxu0 %v442
            %462 = vmatprep.subr.bf16.mxu0 0
            %463 = vmatpush1.bf16.msra.mxu0 %v441
            %464 = vmatprep.subr.bf16.mxu0 0
            %465 = vmatpush1.bf16.msra.mxu0 %v440
            %466 = vmatprep.subr.bf16.mxu0 0
            %467 = vmatpush1.bf16.msra.mxu0 %v439
            %468 = vmatprep.subr.bf16.mxu0 0
            %469 = vmatpush1.bf16.msra.mxu0 %v438
            %470 = vmatprep.subr.bf16.mxu0 0
            %471 = vmatpush2.bf16.msra.mxu0 0
            %472 = vmatprep.subr.bf16.mxu0 0
            %473 = vmatpush2.bf16.msra.mxu0 0
            %474 = vmatprep.subr.bf16.mxu0 0
            %475 = vmatpush2.bf16.msra.mxu0 0
            %476 = vmatprep.subr.bf16.mxu0 0
            %477 = vmatpush2.bf16.msra.mxu0 0
            %478 = vmatprep.subr.bf16.mxu0 0
            %479 = vmatpush2.bf16.msra.mxu0 0
            %480 = vmatprep.subr.bf16.mxu0 0
            %481 = vmatpush2.bf16.msra.mxu0 0
            %482 = vmatprep.subr.bf16.mxu0 0
            %483 = vmatpush2.bf16.msra.mxu0 0
            %484 = vmatprep.subr.bf16.mxu0 0
            %485 = vmatpush2.bf16.msra.mxu0 0
            %486 = vmatprep.mubr.bf16.mxu0 0
            %487 = vmatmul.mubr.bf16.gmra.mxu0 %v404
            %v488 = vpop.f32.mrf.mxu0
            %v489 = vadd.f32 %v405, %v488
            %v490 = vpop.f32.mrf.mxu0
            %v491 = vpop.f32.mrf.mxu0
            %v492 = vpop.f32.mrf.mxu0
            %493 = vdwg.mxu0
            %494 = vst [vmem:[#allocation2 + $0x4] sm:$0x1] %v400
            %495 = vst [vmem:[#allocation2 + $0x5] sm:$0x1] %v489
          $region60: #{classifier_forward.1} parent=55 // pred_fallthru
            _
          %v496 = vld [vmem:[#allocation2 + $0x4] sm:$0x1]
          %v497 = vld [vmem:[#allocation2 + $0x5] sm:$0x1]
          %s498 = smul.u32 %s23, 2
          %s499 = smul.addr %s498, 4
          %s500 = scalar_lea.vmem [#allocation3], %s499
          %v501 = vld [vmem:[%s500] sm:$0xf]
          %v502 = vld [vmem:[%s500 + $0x4] sm:$0xf]
          %v503 = vunpack.c.l.bf16 %v501
          %v504 = vunpack.c.l.bf16 %v502
          %v505 = vlaneseq
          %v506 = vshrl.u32 %v505, 7
          %v507 = vsub.s32 0, %v506
          %v508 = vrot.slane %v496, %v507
          %v509 = vmul.f32 %v503, %v508
          %v510 = vmul.f32 %v504, %v508
          %v511 = vpack.c.bf16 %v510, %v509
          %v512 = vlaneseq
          %v513 = vshrl.u32 %v512, 7
          %v514 = vsub.s32 0, %v513
          %v515 = vrot.slane %v497, %v514
          %v532 = vunpack.c.l.b16 %v370
          %v533 = vunpack.c.l.b16 %v371
          %v534 = vunpack.c.l.b16 %v372
          %v535 = vunpack.c.l.b16 %v373
          %v536 = vunpack.c.l.b16 %v374
          %v537 = vunpack.c.l.b16 %v375
          %v538 = vunpack.c.l.b16 %v376
          %v539 = vunpack.c.l.b16 %v377
          %v540 = vunpack.c.l.b16 %v378
          %v541 = vunpack.c.l.b16 %v379
          %v542 = vunpack.c.l.b16 %v380
          %v543 = vunpack.c.l.b16 %v381
          %v544 = vunpack.c.l.b16 %v382
          %v545 = vunpack.c.l.b16 %v383
          %v546 = vunpack.c.l.b16 %v384
          %v547 = vunpack.c.l.b16 %v385
          %v548 = vpack.c.b16 %v533, %v532
          %v549 = vpack.c.b16 %v535, %v534
          %v550 = vpack.c.b16 %v537, %v536
          %v551 = vpack.c.b16 %v539, %v538
          %v552 = vpack.c.b16 %v541, %v540
          %v553 = vpack.c.b16 %v543, %v542
          %v554 = vpack.c.b16 %v545, %v544
          %v555 = vpack.c.b16 %v547, %v546
          %564 = vmatprep.subr.bf16.mxu0 0
          %565 = vmatpush1.bf16.msra.mxu0 %v555
          %566 = vmatprep.subr.bf16.mxu0 0
          %567 = vmatpush1.bf16.msra.mxu0 %v554
          %568 = vmatprep.subr.bf16.mxu0 0
          %569 = vmatpush1.bf16.msra.mxu0 %v553
          %570 = vmatprep.subr.bf16.mxu0 0
          %571 = vmatpush1.bf16.msra.mxu0 %v552
          %572 = vmatprep.subr.bf16.mxu0 0
          %573 = vmatpush1.bf16.msra.mxu0 %v551
          %574 = vmatprep.subr.bf16.mxu0 0
          %575 = vmatpush1.bf16.msra.mxu0 %v550
          %576 = vmatprep.subr.bf16.mxu0 0
          %577 = vmatpush1.bf16.msra.mxu0 %v549
          %578 = vmatprep.subr.bf16.mxu0 0
          %579 = vmatpush1.bf16.msra.mxu0 %v548
          %580 = vmatprep.subr.bf16.mxu0 0
          %581 = vmatpush2.bf16.msra.mxu0 0
          %582 = vmatprep.subr.bf16.mxu0 0
          %583 = vmatpush2.bf16.msra.mxu0 0
          %584 = vmatprep.subr.bf16.mxu0 0
          %585 = vmatpush2.bf16.msra.mxu0 0
          %586 = vmatprep.subr.bf16.mxu0 0
          %587 = vmatpush2.bf16.msra.mxu0 0
          %588 = vmatprep.subr.bf16.mxu0 0
          %589 = vmatpush2.bf16.msra.mxu0 0
          %590 = vmatprep.subr.bf16.mxu0 0
          %591 = vmatpush2.bf16.msra.mxu0 0
          %592 = vmatprep.subr.bf16.mxu0 0
          %593 = vmatpush2.bf16.msra.mxu0 0
          %594 = vmatprep.subr.bf16.mxu0 0
          %595 = vmatpush2.bf16.msra.mxu0 0
          %596 = vmatprep.mubr.bf16.mxu0 0
          %597 = vmatmul.mubr.bf16.gmra.mxu0 %v511
          %v598 = vpop.f32.mrf.mxu0
          %v599 = vadd.f32 %v515, %v598
          %v600 = vpop.f32.mrf.mxu0
          %v601 = vpop.f32.mrf.mxu0
          %v602 = vadd.f32 %v515, %v601
          %v603 = vpop.f32.mrf.mxu0
          %604 = vdwg.mxu0
          %v605 = vmax.f32 %v599, 0.0
          %v606 = vmax.f32 %v602, 0.0
          %v607 = vld [vmem:[#allocation2 + $0x2] sm:$0x1]
          %v608 = vadd.f32 %v605, %v606
          %v609 = vrot.slane %v608, 4
          %v610 = vadd.f32 %v608, %v609
          %v611 = vrot.slane %v610, 2
          %v612 = vadd.f32 %v610, %v611
          %v613 = vrot.slane %v612, 1
          %v614 = vadd.f32 %v612, %v613
          %v615 = vadd.f32 %v607, %v614
          %616 = vst [vmem:[#allocation2 + $0x2] sm:$0x1] %v615
          %v617 = vld [vmem:[#allocation2 + $0x3] sm:$0x1]
          %v618 = vmul.f32 %v605, %v605
          %v619 = vmul.f32 %v606, %v606
          %v620 = vadd.f32 %v618, %v619
          %v621 = vrot.slane %v620, 4
          %v622 = vadd.f32 %v620, %v621
          %v623 = vrot.slane %v622, 2
          %v624 = vadd.f32 %v622, %v623
          %v625 = vrot.slane %v624, 1
          %v626 = vadd.f32 %v624, %v625
          %v627 = vadd.f32 %v617, %v626
          %628 = vst [vmem:[#allocation2 + $0x3] sm:$0x1] %v627
          %v629 = vpack.c.bf16 %v606, %v605
          %v631 = vunpack.c.l.b16 %v629
          %v632 = vunpack.c.h.b16 %v629
          %v633 = vpack.c.b16 %v631, %v631
          %v634 = vpack.c.b16 %v632, %v632
          %s637 = smul.addr %s498, 4
          %s638 = scalar_lea.vmem [#allocation4], %s637
          %639 = vst [vmem:[%s638] sm:$0xf] %v633
          %640 = vst [vmem:[%s638 + $0x4] sm:$0xf] %v634
        $region56: #{classifier_forward.1} parent=31 // pred_fallthru
          _
        %p641 = scmp.eq.s32.totalorder %s22, 2
        // Predicated region
        $region61: #{classifier_forward.1} parent=31 // pred_check
          %p642 = pneg %p641
        $region62: #{classifier_forward.1} parent=31 // pred_check_branch
          %644 = sbr.rel (%p642) target = $region64
        $region63: #{classifier_forward.1} parent=31 // pred_region
          %v645 = vld [vmem:[#allocation7 + $0x50] sm:$0xf]
          %v646 = vld [vmem:[#allocation7 + $0x54] sm:$0xf]
          %v647 = vld [vmem:[#allocation7 + $0x58] sm:$0xf]
          %v648 = vld [vmem:[#allocation7 + $0x5c] sm:$0xf]
          %v649 = vld [vmem:[#allocation7 + $0x60] sm:$0xf]
          %v650 = vld [vmem:[#allocation7 + $0x64] sm:$0xf]
          %v651 = vld [vmem:[#allocation7 + $0x68] sm:$0xf]
          %v652 = vld [vmem:[#allocation7 + $0x6c] sm:$0xf]
          %v653 = vld [vmem:[#allocation7 + $0x70] sm:$0xf]
          %v654 = vld [vmem:[#allocation7 + $0x74] sm:$0xf]
          %v655 = vld [vmem:[#allocation7 + $0x78] sm:$0xf]
          %v656 = vld [vmem:[#allocation7 + $0x7c] sm:$0xf]
          %v657 = vld [vmem:[#allocation7 + $0x80] sm:$0xf]
          %v658 = vld [vmem:[#allocation7 + $0x84] sm:$0xf]
          %v659 = vld [vmem:[#allocation7 + $0x88] sm:$0xf]
          %v660 = vld [vmem:[#allocation7 + $0x8c] sm:$0xf]
          %p661 = scmp.eq.s32.totalorder %s23, 0
          // Predicated region
          $region65: #{classifier_forward.1} parent=63 // pred_check
            %p662 = pneg %p661
          $region66: #{classifier_forward.1} parent=63 // pred_check_branch
            %664 = sbr.rel (%p662) target = $region68
          $region67: #{classifier_forward.1} parent=63 // pred_region
            %v665 = vld [vmem:[#allocation2 + $0x2] sm:$0x1]
            %v666 = vmul.f32 %v665, 0.03125
            %v667 = vld [vmem:[#allocation2 + $0x3] sm:$0x1]
            %v668 = vmul.f32 %v667, 0.03125
            %v669 = vmul.f32 %v666, %v666
            %v670 = vsub.f32 %v668, %v669
            %v671 = vmax.f32 %v670, 0.0
            %v672 = vld [vmem:[#allocation9 + $0x4] sm:$0x1]
            %v673 = vadd.f32 %v671, 1e-05
            %v674 = vrsqrt.pop %v673
            %v675 = vmul.f32 %v672, %v674
            %v676 = vld [vmem:[#allocation9 + $0x5] sm:$0x1]
            %v677 = vmul.f32 %v666, %v675
            %v678 = vsub.f32 %v676, %v677
            %v679 = vpack.c.bf16 %v678, %v678
            %v680 = vld [vmem:[#allocation9 + $0x6] sm:$0x1]
            %v697 = vunpack.c.l.b16 %v645
            %v698 = vunpack.c.l.b16 %v646
            %v699 = vunpack.c.l.b16 %v647
            %v700 = vunpack.c.l.b16 %v648
            %v701 = vunpack.c.l.b16 %v649
            %v702 = vunpack.c.l.b16 %v650
            %v703 = vunpack.c.l.b16 %v651
            %v704 = vunpack.c.l.b16 %v652
            %v705 = vunpack.c.l.b16 %v653
            %v706 = vunpack.c.l.b16 %v654
            %v707 = vunpack.c.l.b16 %v655
            %v708 = vunpack.c.l.b16 %v656
            %v709 = vunpack.c.l.b16 %v657
            %v710 = vunpack.c.l.b16 %v658
            %v711 = vunpack.c.l.b16 %v659
            %v712 = vunpack.c.l.b16 %v660
            %v713 = vpack.c.b16 %v698, %v697
            %v714 = vpack.c.b16 %v700, %v699
            %v715 = vpack.c.b16 %v702, %v701
            %v716 = vpack.c.b16 %v704, %v703
            %v717 = vpack.c.b16 %v706, %v705
            %v718 = vpack.c.b16 %v708, %v707
            %v719 = vpack.c.b16 %v710, %v709
            %v720 = vpack.c.b16 %v712, %v711
            %729 = vmatprep.subr.bf16.mxu0 0
            %730 = vmatpush1.bf16.msra.mxu0 %v720
            %731 = vmatprep.subr.bf16.mxu0 0
            %732 = vmatpush1.bf16.msra.mxu0 %v719
            %733 = vmatprep.subr.bf16.mxu0 0
            %734 = vmatpush1.bf16.msra.mxu0 %v718
            %735 = vmatprep.subr.bf16.mxu0 0
            %736 = vmatpush1.bf16.msra.mxu0 %v717
            %737 = vmatprep.subr.bf16.mxu0 0
            %738 = vmatpush1.bf16.msra.mxu0 %v716
            %739 = vmatprep.subr.bf16.mxu0 0
            %740 = vmatpush1.bf16.msra.mxu0 %v715
            %741 = vmatprep.subr.bf16.mxu0 0
            %742 = vmatpush1.bf16.msra.mxu0 %v714
            %743 = vmatprep.subr.bf16.mxu0 0
            %744 = vmatpush1.bf16.msra.mxu0 %v713
            %745 = vmatprep.subr.bf16.mxu0 0
            %746 = vmatpush2.bf16.msra.mxu0 0
            %747 = vmatprep.subr.bf16.mxu0 0
            %748 = vmatpush2.bf16.msra.mxu0 0
            %749 = vmatprep.subr.bf16.mxu0 0
            %750 = vmatpush2.bf16.msra.mxu0 0
            %751 = vmatprep.subr.bf16.mxu0 0
            %752 = vmatpush2.bf16.msra.mxu0 0
            %753 = vmatprep.subr.bf16.mxu0 0
            %754 = vmatpush2.bf16.msra.mxu0 0
            %755 = vmatprep.subr.bf16.mxu0 0
            %756 = vmatpush2.bf16.msra.mxu0 0
            %757 = vmatprep.subr.bf16.mxu0 0
            %758 = vmatpush2.bf16.msra.mxu0 0
            %759 = vmatprep.subr.bf16.mxu0 0
            %760 = vmatpush2.bf16.msra.mxu0 0
            %761 = vmatprep.mubr.bf16.mxu0 0
            %762 = vmatmul.mubr.bf16.gmra.mxu0 %v679
            %v763 = vpop.f32.mrf.mxu0
            %v764 = vadd.f32 %v680, %v763
            %v765 = vpop.f32.mrf.mxu0
            %v766 = vpop.f32.mrf.mxu0
            %v767 = vpop.f32.mrf.mxu0
            %768 = vdwg.mxu0
            %769 = vst [vmem:[#allocation2 + $0x6] sm:$0x1] %v675
            %770 = vst [vmem:[#allocation2 + $0x7] sm:$0x1] %v764
          $region68: #{classifier_forward.1} parent=63 // pred_fallthru
            _
          %v771 = vld [vmem:[#allocation2 + $0x6] sm:$0x1]
          %v772 = vld [vmem:[#allocation2 + $0x7] sm:$0x1]
          %s773 = smul.u32 %s23, 2
          %s774 = smul.addr %s773, 4
          %s775 = scalar_lea.vmem [#allocation4], %s774
          %v776 = vld [vmem:[%s775] sm:$0xf]
          %v777 = vld [vmem:[%s775 + $0x4] sm:$0xf]
          %v778 = vunpack.c.l.bf16 %v776
          %v779 = vunpack.c.l.bf16 %v777
          %v780 = vlaneseq
          %v781 = vshrl.u32 %v780, 7
          %v782 = vsub.s32 0, %v781
          %v783 = vrot.slane %v771, %v782
          %v784 = vmul.f32 %v778, %v783
          %v785 = vmul.f32 %v779, %v783
          %v786 = vpack.c.bf16 %v785, %v784
          %v787 = vlaneseq
          %v788 = vshrl.u32 %v787, 7
          %v789 = vsub.s32 0, %v788
          %v790 = vrot.slane %v772, %v789
          %v807 = vunpack.c.l.b16 %v645
          %v808 = vunpack.c.l.b16 %v646
          %v809 = vunpack.c.l.b16 %v647
          %v810 = vunpack.c.l.b16 %v648
          %v811 = vunpack.c.l.b16 %v649
          %v812 = vunpack.c.l.b16 %v650
          %v813 = vunpack.c.l.b16 %v651
          %v814 = vunpack.c.l.b16 %v652
          %v815 = vunpack.c.l.b16 %v653
          %v816 = vunpack.c.l.b16 %v654
          %v817 = vunpack.c.l.b16 %v655
          %v818 = vunpack.c.l.b16 %v656
          %v819 = vunpack.c.l.b16 %v657
          %v820 = vunpack.c.l.b16 %v658
          %v821 = vunpack.c.l.b16 %v659
          %v822 = vunpack.c.l.b16 %v660
          %v823 = vpack.c.b16 %v808, %v807
          %v824 = vpack.c.b16 %v810, %v809
          %v825 = vpack.c.b16 %v812, %v811
          %v826 = vpack.c.b16 %v814, %v813
          %v827 = vpack.c.b16 %v816, %v815
          %v828 = vpack.c.b16 %v818, %v817
          %v829 = vpack.c.b16 %v820, %v819
          %v830 = vpack.c.b16 %v822, %v821
          %839 = vmatprep.subr.bf16.mxu0 0
          %840 = vmatpush1.bf16.msra.mxu0 %v830
          %841 = vmatprep.subr.bf16.mxu0 0
          %842 = vmatpush1.bf16.msra.mxu0 %v829
          %843 = vmatprep.subr.bf16.mxu0 0
          %844 = vmatpush1.bf16.msra.mxu0 %v828
          %845 = vmatprep.subr.bf16.mxu0 0
          %846 = vmatpush1.bf16.msra.mxu0 %v827
          %847 = vmatprep.subr.bf16.mxu0 0
          %848 = vmatpush1.bf16.msra.mxu0 %v826
          %849 = vmatprep.subr.bf16.mxu0 0
          %850 = vmatpush1.bf16.msra.mxu0 %v825
          %851 = vmatprep.subr.bf16.mxu0 0
          %852 = vmatpush1.bf16.msra.mxu0 %v824
          %853 = vmatprep.subr.bf16.mxu0 0
          %854 = vmatpush1.bf16.msra.mxu0 %v823
          %855 = vmatprep.subr.bf16.mxu0 0
          %856 = vmatpush2.bf16.msra.mxu0 0
          %857 = vmatprep.subr.bf16.mxu0 0
          %858 = vmatpush2.bf16.msra.mxu0 0
          %859 = vmatprep.subr.bf16.mxu0 0
          %860 = vmatpush2.bf16.msra.mxu0 0
          %861 = vmatprep.subr.bf16.mxu0 0
          %862 = vmatpush2.bf16.msra.mxu0 0
          %863 = vmatprep.subr.bf16.mxu0 0
          %864 = vmatpush2.bf16.msra.mxu0 0
          %865 = vmatprep.subr.bf16.mxu0 0
          %866 = vmatpush2.bf16.msra.mxu0 0
          %867 = vmatprep.subr.bf16.mxu0 0
          %868 = vmatpush2.bf16.msra.mxu0 0
          %869 = vmatprep.subr.bf16.mxu0 0
          %870 = vmatpush2.bf16.msra.mxu0 0
          %871 = vmatprep.mubr.bf16.mxu0 0
          %872 = vmatmul.mubr.bf16.gmra.mxu0 %v786
          %v873 = vpop.f32.mrf.mxu0
          %v874 = vadd.f32 %v790, %v873
          %v875 = vpop.f32.mrf.mxu0
          %v876 = vpop.f32.mrf.mxu0
          %v877 = vadd.f32 %v790, %v876
          %v878 = vpop.f32.mrf.mxu0
          %879 = vdwg.mxu0
          %880 = vmax.xlane.f32.xlu0 %v874
          %v881 = vpop.xlane.xlu0 %880
          %882 = vmax.xlane.f32.xlu0 %v877
          %v883 = vpop.xlane.xlu0 %882
          %v884 = vsub.f32 %v874, %v881
          %v885 = vsub.f32 %v877, %v883
          %v886 = vmul.f32 %v884, 1.442695
          %v887 = vpow.pop %v886
          %v888 = vmul.f32 %v885, 1.442695
          %v889 = vpow.pop %v888
          %890 = vadd.xlane.f32.xlu0 %v887
          %v891 = vpop.xlane.xlu0 %890
          %892 = vadd.xlane.f32.xlu0 %v889
          %v893 = vpop.xlane.xlu0 %892
          %v894 = vrcp.pop %v891
          %v895 = vrcp.pop %v893
          %v896 = vmul.f32 %v887, %v894
          %v897 = vmul.f32 %v889, %v895
          %898 = vst [vmem:[%s246] sm:$0xff] %v896
          %899 = vst [vmem:[%s246 + $0x8] sm:$0xff] %v897
        $region64: #{classifier_forward.1} parent=31 // pred_fallthru
          _
        %p900 = scmp.eq.s32.totalorder %s22, 2
        %s901 = scalar_select %p900, %s23, 0
        %s902 = smul.u32 2, %s901
        %p903 = scmp.lt.s32.totalorder %s902, 3
        %s904 = scalar_select %p903, %s902, 3
        %s905 = smul.addr %s904, 8
        %s906 = scalar_lea.vmem %s3, %s905
        // Predicated region
        $region69: #{classifier_forward.1} parent=31 // pred_check
          %p907 = pneg %p124
        $region70: #{classifier_forward.1} parent=31 // pred_check_branch
          %909 = sbr.rel (%p907) target = $region72
        $region71: #{classifier_forward.1} parent=31 // pred_region
          %p910 = scmp.eq.s32.totalorder %s22, 2
          %s911 = scalar_select %p910, %s23, 0
          %s912 = smul.u32 2, %s911
        $region72: #{classifier_forward.1} parent=31 // pred_fallthru
          _
      $region32: #{classifier_forward.1} parent=5 // pred_fallthru
        _
      %p913 = scmp.le.s32.totalorder 2, %s13
      // Predicated region
      $region73: #{classifier_forward.1} parent=5 // pred_check
        %p914 = pneg %p913
      $region74: #{classifier_forward.1} parent=5 // pred_check_branch
        %916 = sbr.rel (%p914) target = $region76
      $region75: #{classifier_forward.1} parent=5 // pred_region
        %s917 = ssub.s32 %s13, 2
        // Predicated region
        $region77: #{classifier_forward.1} parent=75 // pred_check
          %p918 = pneg %p130
        $region78: #{classifier_forward.1} parent=75 // pred_check_branch
          %920 = sbr.rel (%p918) target = $region80
        $region79: #{classifier_forward.1} parent=75 // pred_region
          %p921 = scmp.eq.s32.totalorder %s24, 2
          %s922 = scalar_select %p921, %s25, 0
          %s923 = smul.u32 2, %s922
          %p924 = scmp.lt.s32.totalorder %s923, 3
          %s925 = scalar_select %p924, %s923, 3
          %s926 = smul.addr %s925, 8
          %s927 = scalar_lea.vmem %s3, %s926
        $region80: #{classifier_forward.1} parent=75 // pred_fallthru
          _
      $region76: #{classifier_forward.1} parent=5 // pred_fallthru
        _
    $region6: #{classifier_forward.1} parent=1 // loop_footer
      %s17 = sadd.s32 1, %s13
    $region7: #{classifier_forward.1} parent=1 // loop_footer_branch
      %12 = sbr.rel target = $region3
    $region8: #{classifier_forward.1} parent=1 // loop_exit
      _
    %928 = vsyncpa [#allocation6], 1
    %s929 = scalar_lea.sflag [#allocation6], 1
    %930 = vsyncpa %s929, 1
    %931 = vsyncpa [#allocation8], 1

</llo_original>
